<compile_context>
chip_gen: v6e
topology: v6e:2x2x1
jax: 0.10.0
libtpu: 0.0.40
codegen_flags: <defaults>
</compile_context>

<pallas_src>
import jax
import jax.numpy as jnp
from jax.experimental import pallas as pl
from jax.experimental.pallas import tpu as pltpu

_MAX_WIDTH = 4096  # cap on the lane-dense last dim (always a multiple of 128)


def _leaky_kernel(a_ref, x_ref, o_ref):
    x = x_ref[...]
    a = a_ref[0].astype(x.dtype)           # f32 SMEM scalar -> input dtype
    o_ref[...] = jnp.where(x < 0, a * x, x).astype(o_ref.dtype)


def _chip_tiling():
    """Returns (target_block_bytes, vmem_limit_bytes, is_v7) per generation."""
    kind = ""
    try:
        kind = jax.devices()[0].device_kind.lower()
    except Exception:  # defensive: the default below is safe on every chip
        pass
    if "v7" in kind:
        # 8 MiB blocks; double-buffered in+out = 32 MiB == the default scoped
        # limit, so raise it explicitly (64 MiB physical per TensorCore).
        return 8 << 20, 40 << 20, True
    if "v6" in kind:
        # 4 MiB blocks; 16 MiB double-buffered fits the 32 MiB default.
        return 4 << 20, None, False
    # v5e (16 MiB default scoped VMEM) and unknown chips: stay conservative.
    return 2 << 20, None, False


def _pick_width(n):
    """Largest multiple of 128 that divides n, capped at _MAX_WIDTH (or None)."""
    w = min(_MAX_WIDTH, (n // 128) * 128)
    for width in range(w, 0, -128):
        if n % width == 0:
            return width
    return None


def learnable_leaky_relu(x, a):
    """Applies where(x < 0, a*x, x) elementwise via a Pallas TPU kernel.

    x: any-shaped float array (NCHW in the tests). Returns same shape/dtype.
    a: learnable slope (python/jnp scalar; torch init is 1.0).
    """
    orig_shape = x.shape
    orig_dtype = x.dtype
    n = int(x.size)

    if n == 0:
        return x

    width = _pick_width(n)
    if width is None:
        # numel not a multiple of 128: padding would force a full-array copy
        # (pad) plus a full-array slice on the way out (~3x HBM traffic); a
        # fused jnp.where is strictly cheaper for this rare ragged case.
        a_c = jnp.asarray(a, dtype=orig_dtype)
        return jnp.where(x < 0, a_c * x, x)

    rows = n // width
    slab = x.reshape(rows, width)            # free: contiguous reshape

    itemsize = jnp.dtype(orig_dtype).itemsize
    target_bytes, vmem_limit, is_v7 = _chip_tiling()

    # Block rows sized by bytes (dtype-independent DMA chunks), multiple of 8.
    block_rows = max(8, (target_bytes // (width * itemsize)) // 8 * 8)
    if block_rows >= rows:
        block_rows = rows                    # single block == full array
        if is_v7 and rows >= 16 and n * itemsize > (1 << 20):
            # Keep both v7x TensorCores busy: at least 2 parallel grid steps.
            block_rows = (((rows + 1) // 2) + 7) // 8 * 8
    grid = (pl.cdiv(rows, block_rows),)      # ragged last block masked by Pallas

    a_param = jnp.asarray(a, dtype=jnp.float32).reshape(1)

    cost = pl.CostEstimate(
        flops=2 * n,                         # compare + multiply/select
        transcendentals=0,
        bytes_accessed=2 * n * itemsize,     # one read + one write of x
    )

    out = pl.pallas_call(
        _leaky_kernel,
        out_shape=jax.ShapeDtypeStruct((rows, width), orig_dtype),
        grid=grid,
        in_specs=[
            pl.BlockSpec(memory_space=pltpu.SMEM),                  # slope a
            pl.BlockSpec((block_rows, width), lambda i: (i, 0)),    # x tiles
        ],
        out_specs=pl.BlockSpec((block_rows, width), lambda i: (i, 0)),
        compiler_params=pltpu.CompilerParams(
            dimension_semantics=("parallel",),
            vmem_limit_bytes=vmem_limit,
        ),
        cost_estimate=cost,
    )(a_param, slab)

    return out.reshape(orig_shape)           # free: contiguous reshape


if __name__ == "__main__":
    key = jax.random.PRNGKey(0)
    # Small NCHW input, consistent with a conv-activation module.
    x = jax.random.normal(key, (2, 4, 16, 16), dtype=jnp.float32)

    # Deterministic parameter init matching torch.ones(1).
    a_init = 1.0
    y = jax.block_until_ready(learnable_leaky_relu(x, a_init))
    ref = jnp.where(x < 0, a_init * x, x)
    assert y.shape == x.shape and y.dtype == x.dtype
    assert jnp.allclose(y, ref, atol=1e-6, rtol=1e-6)

    # Non-trivial slope so the negative branch is exercised.
    a2 = 0.2
    y2 = jax.block_until_ready(learnable_leaky_relu(x, a2))
    ref2 = jnp.where(x < 0, a2 * x, x)
    assert jnp.allclose(y2, ref2, atol=1e-6, rtol=1e-6)

    # Ragged numel (not a multiple of 128) exercises the fused-where fallback.
    x3 = jax.random.normal(jax.random.PRNGKey(1), (3, 5, 7), dtype=jnp.float32)
    y3 = jax.block_until_ready(learnable_leaky_relu(x3, a2))
    ref3 = jnp.where(x3 < 0, a2 * x3, x3)
    assert jnp.allclose(y3, ref3, atol=1e-6, rtol=1e-6)

    print("KERNEL_OK")
</pallas_src>

<mosaic_0001>
module attributes {stable_mosaic.version = 11 : i64} {
  func.func @_leaky_kernel(%arg0: i32, %arg1: memref<1xf32, #tpu.memory_space<smem>>, %arg2: memref<1x2048xf32, #tpu.memory_space<vmem>>, %arg3: memref<1x2048xf32, #tpu.memory_space<vmem>>) attributes {dimension_semantics = [#tpu.dimension_semantics<parallel>], iteration_bounds = array<i64: 1>, scalar_prefetch = 0 : i64, scratch_operands = 0 : i64, tpu.core_type = #tpu.core_type<tc>, window_params = [{transform_indices = @transform_0, window_bounds = array<i64: 1>}, {transform_indices = @transform_1, window_bounds = array<i64: 1, 2048>}, {transform_indices = @transform_2, window_bounds = array<i64: 1, 2048>}]} {
    %c0 = arith.constant 0 : index
    %c0_0 = arith.constant 0 : index
    %0 = vector.load %arg2[%c0, %c0_0] : memref<1x2048xf32, #tpu.memory_space<vmem>>, vector<1x2048xf32>
    %c0_1 = arith.constant 0 : index
    %1 = memref.load %arg1[%c0_1] : memref<1xf32, #tpu.memory_space<smem>>
    %cst = arith.constant 0.000000e+00 : f32
    %2 = vector.broadcast %cst : f32 to vector<1x2048xf32>
    %3 = arith.cmpf olt, %0, %2 : vector<1x2048xf32>
    %4 = vector.broadcast %1 : f32 to vector<1x2048xf32>
    %5 = arith.mulf %4, %0 : vector<1x2048xf32>
    %6 = arith.select %3, %5, %0 : vector<1x2048xi1>, vector<1x2048xf32>
    %c0_2 = arith.constant 0 : index
    %c0_3 = arith.constant 0 : index
    %7 = vector.load %arg3[%c0_2, %c0_3] : memref<1x2048xf32, #tpu.memory_space<vmem>>, vector<1x2048xf32>
    tpu.vector_store %arg3[%c0_2, %c0_3], %6 {strides = array<i32>} : memref<1x2048xf32, #tpu.memory_space<vmem>>, vector<1x2048xf32>,
    return
  }
  func.func @transform_0(%arg0: i32) -> i32 {
    %c0_i32 = arith.constant 0 : i32
    %c0_i32_0 = arith.constant 0 : i32
    return %c0_i32 : i32
  }
  func.func @transform_1(%arg0: i32) -> (i32, i32) {
    %c0_i32 = arith.constant 0 : i32
    %c0_i32_0 = arith.constant 0 : i32
    return %arg0, %c0_i32 : i32, i32
  }
  func.func @transform_2(%arg0: i32) -> (i32, i32) {
    %c0_i32 = arith.constant 0 : i32
    %c0_i32_0 = arith.constant 0 : i32
    return %arg0, %c0_i32 : i32, i32
  }
}

</mosaic_0001>

<llo_original>
// kernel: tpu_custom_call.1
$region0: #{tpu_custom_call.1}
  #allocation0 [shape = 'u32[]', space=smem, size = 0x4, offset = 0x4, fixed_abs, tag = 'smem constant byte address 0x4 - core index']
  #allocation1 [shape = 'u32[144,128]{1,0:T(1,128)}', space=vmem, size = 0x12000, scoped, tag = 'internal scratch']
  #allocation2 [shape = 'f32[1]{0:T(128)S(6)}', space=smem, size = 0x200, scoped, tag = 'scoped memory for tpu_custom_call.1']
  %s0 = inlined_call_operand.<no memory space> [shape: f32[1], index: 0, kind: input, shape index: {}]
  %s1 = inlined_call_operand.hbm [shape: f32[1,2048], index: 1, kind: input, shape index: {}]
  %s2 = inlined_call_operand.hbm [shape: f32[1,2048], index: 2, kind: output, shape index: {}]
  %s3 = sld [smem:[#allocation0]]
  $region22: #{tpu_custom_call.1} parent=0
    _
  %s5 = ssub.s32 1, %s3
  %s6 = scalar_select 0, %s5, %s3
  %7 = sst [smem:[#allocation2]] %s0
  $region1: #{tpu_custom_call.1} parent=0
    #allocation3 [shape = 'u8[8192]{0}', space=vmem, size = 0x2000, scoped, tag = 'input window, operand 1, single buffered']
    #allocation4 [shape = 's32[1]{0}', space=sflag, size = 0x4, scoped, tag = 'scoped memory for tpu_custom_call.1']
    #allocation5 [shape = 's32[1]{0}', space=sflag, size = 0x4, scoped, tag = 'scoped memory for tpu_custom_call.1']
    #allocation6 [shape = 'u8[8192]{0}', space=vmem, size = 0x2000, scoped, tag = 'output window, operand 0, single buffered']
    %8 = vsyncpa [#allocation4], 0
    %9 = vsyncpa [#allocation5], 0
    // Predicated region
    $region2: #{tpu_custom_call.1} parent=1 // pred_check
      _
    $region3: #{tpu_custom_call.1} parent=1 // pred_check_branch
      %11 = sbr.rel (0) target = $region5
    $region4: #{tpu_custom_call.1} parent=1 // pred_region
      _
    $region5: #{tpu_custom_call.1} parent=1 // pred_fallthru
      _
    // Predicated region
    $region6: #{tpu_custom_call.1} parent=1 // pred_check
      _
    $region7: #{tpu_custom_call.1} parent=1 // pred_check_branch
      %13 = sbr.rel (0) target = $region9
    $region8: #{tpu_custom_call.1} parent=1 // pred_region
      %s15 = ssub.s32 256, 256
      %16 = vsyncadd [#allocation4], %s15
      %s18 = sshll.u32 [#allocation3], 4
      %s19 = int_to_ptr.vmem [resolvable:$true] %s18
      %21 = dma.hbm_to_vmem [thread:$0]  %s1, 256, %s19, [#allocation4]
    $region9: #{tpu_custom_call.1} parent=1 // pred_fallthru
      _
    // Predicated region
    $region10: #{tpu_custom_call.1} parent=1 // pred_check
      _
    $region11: #{tpu_custom_call.1} parent=1 // pred_check_branch
      %23 = sbr.rel (0) target = $region13
    $region12: #{tpu_custom_call.1} parent=1 // pred_region
      %24 = dma.done [#allocation4], 256
    $region13: #{tpu_custom_call.1} parent=1 // pred_fallthru
      _
    %v25 = vld [vmem:[#allocation3] sm:$0xff]
    %v26 = vld [vmem:[#allocation3 + $0x8] sm:$0xff]
    %s27 = sld [smem:[#allocation2]]
    %vm28 = vcmp.lt.f32.partialorder %v25, 0.0
    %vm29 = vcmp.lt.f32.partialorder %v26, 0.0
    %v30 = vstv %s27
    %v31 = vmul.f32 %v30, %v25
    %v32 = vmul.f32 %v30, %v26
    %v33 = vsel %vm28, %v31, %v25
    %v34 = vsel %vm29, %v32, %v26
    %35 = vst [vmem:[#allocation6] sm:$0xff] %v33
    %36 = vst [vmem:[#allocation6 + $0x8] sm:$0xff] %v34
    // Predicated region
    $region14: #{tpu_custom_call.1} parent=1 // pred_check
      _
    $region15: #{tpu_custom_call.1} parent=1 // pred_check_branch
      %38 = sbr.rel (0) target = $region17
    $region16: #{tpu_custom_call.1} parent=1 // pred_region
      %s40 = ssub.s32 256, 256
      %41 = vsyncadd [#allocation5], %s40
      %s43 = sshll.u32 [#allocation6], 4
      %s44 = int_to_ptr.vmem [resolvable:$true] %s43
      %46 = dma.vmem_to_hbm [thread:$0]  %s44, 256, %s2, [#allocation5]
    $region17: #{tpu_custom_call.1} parent=1 // pred_fallthru
      _
    // Predicated region
    $region18: #{tpu_custom_call.1} parent=1 // pred_check
      _
    $region19: #{tpu_custom_call.1} parent=1 // pred_check_branch
      %48 = sbr.rel (0) target = $region21
    $region20: #{tpu_custom_call.1} parent=1 // pred_region
      %49 = dma.done [#allocation5], 256
    $region21: #{tpu_custom_call.1} parent=1 // pred_fallthru
      _
    %50 = vsyncpa [#allocation4], 1
    %51 = vsyncpa [#allocation5], 1

</llo_original>
